<compile_context>
chip_gen: v6e
topology: v6e:2x2x1
jax: 0.10.0
libtpu: 0.0.40
codegen_flags: <defaults>
</compile_context>

<pallas_src>
import jax
import jax.numpy as jnp
import numpy as np
from jax.experimental import pallas as pl
from jax.experimental.pallas import tpu as pltpu

KERNEL_SIZE = 6
STRIDE = 8
PADDING = 2
OUTPUT_PADDING = 1


# ----------------------------------------------------------------------------
# Kernel: one matmul + bias, writing the full 8C stride frame slab.
# Row-major orientation:   a=(TM, C),  b=(C, 8C),  bias=(1, 8C),  o=(TM, 8C)
# Transposed orientation:  a=(8C, C),  b=(C, TN),  bias=(8C, 1),  o=(8C, TN)
# ----------------------------------------------------------------------------
def _matmul_bias_kernel(a_ref, b_ref, bias_ref, o_ref):
    y = jnp.dot(a_ref[...], b_ref[...], preferred_element_type=jnp.float32)
    o_ref[...] = (y + bias_ref[...]).astype(o_ref.dtype)


# ----------------------------------------------------------------------------
# VMEM sizing helpers (all accounting on (8,128)-padded f32 tiles).
# ----------------------------------------------------------------------------
def _round_up(v, m):
    return (v + m - 1) // m * m


def _padded_tile_bytes(rows, cols, itemsize=4, sublane=8, lane=128):
    """Bytes one (rows, cols) f32 VMEM buffer really occupies after (8,128) tiling."""
    return _round_up(max(rows, 1), sublane) * _round_up(max(cols, 1), lane) * itemsize


def _vmem_capacity_bytes():
    """Physical VMEM of the current generation; conservative fallback = v7x (64 MiB)."""
    try:
        cap = getattr(pltpu.get_tpu_info(), "vmem_capacity_bytes", None)
        if cap:
            return int(cap)
    except Exception:
        pass
    return 64 << 20


def _pick_tile(total, per_item_padded_bytes, budget_bytes, align, target_steps=4):
    """Tile length along one grid axis.

    Largest multiple of `align` whose double-buffered (x + out) footprint fits
    `budget_bytes`, additionally capped so the grid keeps >= 2 (preferably
    >= `target_steps`) steps whenever the problem allows it, so the "parallel"
    axis can shard across the two v7x TensorCores.  If the whole axis fits in
    one `align` chunk we just take the full dim (allowed by the block rules).
    """
    if total <= align:
        return total
    n_chunks = -(-total // align)
    budget_chunks = max(1, budget_bytes // (2 * per_item_padded_bytes * align))
    t_chunks = min(budget_chunks, n_chunks)
    steps = min(target_steps, n_chunks)
    if steps > 1:
        t_chunks = min(t_chunks, max(1, n_chunks // steps))
    return t_chunks * align


# ----------------------------------------------------------------------------
# Forward wrapper.
# ----------------------------------------------------------------------------
def video_conv_forward(x, weight, bias):
    """x: (B, T, C) f32; weight: (C_in, C_out, K) (ConvTranspose1d layout); bias: (C,)."""
    B, T, C = x.shape
    C_in, C_out, K = weight.shape
    assert C_in == C and C_out == C and K == KERNEL_SIZE

    f32 = jnp.float32
    T_out = (T - 1) * STRIDE - 2 * PADDING + KERNEL_SIZE + OUTPUT_PADDING  # 8*T - 5
    M = B * T
    EIGHT_C = STRIDE * C

    vmem_cap = _vmem_capacity_bytes()
    vmem_cap_limit = (vmem_cap * 3) // 4          # <= 48 MiB on v7x, <= 96 MiB on v5e/v6e
    tile_budget = min(16 << 20, vmem_cap // 8)    # ~8 MiB on v7x, ~16 MiB on v5e/v6e

    # Pack 8 taps: cols/rows [k*C:(k+1)*C] hold W[:, :, k] for k < 6, zeros for k = 6, 7
    # (the stride-8 gap rows), so one matmul + bias emits the whole frame slab.
    w6 = jnp.transpose(weight, (0, 2, 1)).reshape(C, KERNEL_SIZE * C).astype(f32)     # (C, 6C)
    w8 = jnp.concatenate(
        [w6, jnp.zeros((C, (STRIDE - KERNEL_SIZE) * C), f32)], axis=1)                # (C, 8C)
    b8 = jnp.tile(bias.astype(f32), (STRIDE,))                                        # (8C,)

    lane_dense_rows = (EIGHT_C % 128) == 0

    if lane_dense_rows:
        # ------- Row-major: M rows on sublanes, 8C output slab on lanes (final layout).
        x2 = x.reshape(M, C).astype(f32)
        bias_row = b8.reshape(1, EIGHT_C)

        resident = 2 * (_padded_tile_bytes(C, EIGHT_C) + _padded_tile_bytes(1, EIGHT_C))
        per_row = 4 * (_round_up(C, 128) + _round_up(EIGHT_C, 128))
        TM = _pick_tile(M, per_row, max(tile_budget - resident, 1 << 20), align=8)
        grid = (pl.cdiv(M, TM),)

        vmem_need = (2 * _padded_tile_bytes(TM, C) + 2 * _padded_tile_bytes(TM, EIGHT_C)
                     + resident + (2 << 20))
        vmem_limit = int(min(max(vmem_need, 8 << 20), vmem_cap_limit))

        y = pl.pallas_call(
            _matmul_bias_kernel,
            out_shape=jax.ShapeDtypeStruct((M, EIGHT_C), f32),
            grid=grid,
            in_specs=[
                pl.BlockSpec((TM, C), lambda i: (i, 0)),
                pl.BlockSpec((C, EIGHT_C), lambda i: (0, 0)),       # resident weight
                pl.BlockSpec((1, EIGHT_C), lambda i: (0, 0)),       # resident bias
            ],
            out_specs=pl.BlockSpec((TM, EIGHT_C), lambda i: (i, 0)),
            compiler_params=pltpu.CompilerParams(
                dimension_semantics=("parallel",),
                vmem_limit_bytes=vmem_limit,
            ),
        )(x2, w8, bias_row)
        frame = y.reshape(B, STRIDE * T, C)                          # free view
    else:
        # ------- Transposed: M = B*T on the lane axis -> dense, unmasked stores
        # even when 8C < 128 (e.g. C = 4).  Costs one small XLA transpose back.
        xT = x.reshape(M, C).astype(f32).T                           # (C, M)
        w8T = w8.T                                                   # (8C, C)
        bias_col = b8.reshape(EIGHT_C, 1)

        resident = 2 * (_padded_tile_bytes(EIGHT_C, C) + _padded_tile_bytes(EIGHT_C, 1))
        per_col = 4 * (_round_up(C, 8) + _round_up(EIGHT_C, 8))
        TN = _pick_tile(M, per_col, max(tile_budget - resident, 1 << 20), align=128)
        grid = (pl.cdiv(M, TN),)

        vmem_need = (2 * _padded_tile_bytes(C, TN) + 2 * _padded_tile_bytes(EIGHT_C, TN)
                     + resident + (2 << 20))
        vmem_limit = int(min(max(vmem_need, 8 << 20), vmem_cap_limit))

        yT = pl.pallas_call(
            _matmul_bias_kernel,
            out_shape=jax.ShapeDtypeStruct((EIGHT_C, M), f32),
            grid=grid,
            in_specs=[
                pl.BlockSpec((EIGHT_C, C), lambda j: (0, 0)),        # resident weight
                pl.BlockSpec((C, TN), lambda j: (0, j)),
                pl.BlockSpec((EIGHT_C, 1), lambda j: (0, 0)),        # resident bias
            ],
            out_specs=pl.BlockSpec((EIGHT_C, TN), lambda j: (0, j)),
            compiler_params=pltpu.CompilerParams(
                dimension_semantics=("parallel",),
                vmem_limit_bytes=vmem_limit,
            ),
        )(w8T, xT, bias_col)
        # (8C, M) -> (B, 8T, C): small-C layout fix-up outside the kernel.
        frame = yT.reshape(STRIDE, C, B, T).transpose(2, 3, 0, 1).reshape(B, STRIDE * T, C)

    # padding=2 / output_padding=1 crop: one contiguous slice of the frame.
    return frame[:, PADDING:PADDING + T_out, :]


# ----------------------------------------------------------------------------
# Numpy reference (direct ConvTranspose1d semantics, channels-last in/out).
# ----------------------------------------------------------------------------
def _reference(x, weight, bias):
    x = np.asarray(x); weight = np.asarray(weight); bias = np.asarray(bias)
    B, T, C = x.shape
    T_out = (T - 1) * STRIDE - 2 * PADDING + KERNEL_SIZE + OUTPUT_PADDING
    out = np.broadcast_to(bias, (B, T_out, C)).astype(np.float32).copy()
    for i in range(T):
        for k in range(KERNEL_SIZE):
            o = i * STRIDE + k - PADDING
            if 0 <= o < T_out:
                out[:, o, :] += x[:, i, :] @ weight[:, :, k]
    return out


if __name__ == "__main__":
    fwd = jax.jit(video_conv_forward)

    # Primary case (module shapes): input_channels = 4, sequence length 8.
    B, T, C = 2, 8, 4
    key = jax.random.PRNGKey(0)
    kx, kw, kb = jax.random.split(key, 3)
    x = jax.random.normal(kx, (B, T, C), dtype=jnp.float32)
    weight = jax.random.normal(kw, (C, C, KERNEL_SIZE), dtype=jnp.float32) * 0.1  # (in, out, K)
    bias = jax.random.normal(kb, (C,), dtype=jnp.float32) * 0.1

    out = jax.block_until_ready(fwd(x, weight, bias))
    assert out.shape == (B, STRIDE * T - 5, C), out.shape
    np.testing.assert_allclose(np.asarray(out), _reference(x, weight, bias),
                               rtol=1e-5, atol=1e-5)

    # Secondary self-check: exercises the lane-dense row-major path (8*C % 128 == 0)
    # and a multi-step "parallel" grid.
    C2 = 16
    x2 = jax.random.normal(kx, (B, T, C2), dtype=jnp.float32)
    w2 = jax.random.normal(kw, (C2, C2, KERNEL_SIZE), dtype=jnp.float32) * 0.1
    b2 = jax.random.normal(kb, (C2,), dtype=jnp.float32) * 0.1
    out2 = jax.block_until_ready(fwd(x2, w2, b2))
    assert out2.shape == (B, STRIDE * T - 5, C2), out2.shape
    np.testing.assert_allclose(np.asarray(out2), _reference(x2, w2, b2),
                               rtol=1e-5, atol=1e-5)

    print("KERNEL_OK")
</pallas_src>

<mosaic_0001>
module attributes {stable_mosaic.version = 11 : i64} {
  func.func @_matmul_bias_kernel(%arg0: i32, %arg1: memref<32x4xf32, #tpu.memory_space<vmem>>, %arg2: memref<4x16xf32, #tpu.memory_space<vmem>>, %arg3: memref<32x1xf32, #tpu.memory_space<vmem>>, %arg4: memref<32x16xf32, #tpu.memory_space<vmem>>) attributes {dimension_semantics = [#tpu.dimension_semantics<parallel>], iteration_bounds = array<i64: 1>, scalar_prefetch = 0 : i64, scratch_operands = 0 : i64, tpu.core_type = #tpu.core_type<tc>, window_params = [{pipeline_mode = #tpu.pipeline_mode<synchronous>, transform_indices = @transform_0, window_bounds = array<i64: 32, 4>}, {transform_indices = @transform_1, window_bounds = array<i64: 4, 16>}, {pipeline_mode = #tpu.pipeline_mode<synchronous>, transform_indices = @transform_2, window_bounds = array<i64: 32, 1>}, {transform_indices = @transform_3, window_bounds = array<i64: 32, 16>}]} {
    %c0 = arith.constant 0 : index
    %c0_0 = arith.constant 0 : index
    %0 = vector.load %arg1[%c0, %c0_0] : memref<32x4xf32, #tpu.memory_space<vmem>>, vector<32x4xf32>
    %c0_1 = arith.constant 0 : index
    %c0_2 = arith.constant 0 : index
    %1 = vector.load %arg2[%c0_1, %c0_2] : memref<4x16xf32, #tpu.memory_space<vmem>>, vector<4x16xf32>
    %cst = arith.constant dense<0.000000e+00> : vector<32x16xf32>
    %2 = tpu.matmul %0, %1, %cst {dimension_numbers = #tpu.dot_dimension_numbers<[1], [0], [0], [1], [0, 0, 1, 1], [], []>} : vector<32x4xf32>, vector<4x16xf32>, vector<32x16xf32> -> vector<32x16xf32>
    %c0_3 = arith.constant 0 : index
    %c0_4 = arith.constant 0 : index
    %3 = vector.load %arg3[%c0_3, %c0_4] : memref<32x1xf32, #tpu.memory_space<vmem>>, vector<32x1xf32>
    %4 = vector.broadcast %3 : vector<32x1xf32> to vector<32x16xf32>
    %5 = arith.addf %2, %4 : vector<32x16xf32>
    %c0_5 = arith.constant 0 : index
    %c0_6 = arith.constant 0 : index
    %6 = vector.load %arg4[%c0_5, %c0_6] : memref<32x16xf32, #tpu.memory_space<vmem>>, vector<32x16xf32>
    tpu.vector_store %arg4[%c0_5, %c0_6], %5 {strides = array<i32>} : memref<32x16xf32, #tpu.memory_space<vmem>>, vector<32x16xf32>,
    return
  }
  func.func @transform_0(%arg0: i32) -> (i32, i32) {
    %c0_i32 = arith.constant 0 : i32
    %c0_i32_0 = arith.constant 0 : i32
    %c0_i32_1 = arith.constant 0 : i32
    return %c0_i32, %c0_i32_0 : i32, i32
  }
  func.func @transform_1(%arg0: i32) -> (i32, i32) {
    %c0_i32 = arith.constant 0 : i32
    %c0_i32_0 = arith.constant 0 : i32
    return %c0_i32, %arg0 : i32, i32
  }
  func.func @transform_2(%arg0: i32) -> (i32, i32) {
    %c0_i32 = arith.constant 0 : i32
    %c0_i32_0 = arith.constant 0 : i32
    %c0_i32_1 = arith.constant 0 : i32
    return %c0_i32, %c0_i32_0 : i32, i32
  }
  func.func @transform_3(%arg0: i32) -> (i32, i32) {
    %c0_i32 = arith.constant 0 : i32
    %c0_i32_0 = arith.constant 0 : i32
    return %c0_i32, %arg0 : i32, i32
  }
}

</mosaic_0001>

<llo_original>
// kernel: tile.0
$region0: #{tile.0}
  %s0 = inlined_call_operand.vmem [shape: f32[8,4], index: 0, kind: input, shape index: {}]
  %s1 = inlined_call_operand.vmem [shape: f32[32,1], index: 1, kind: output, shape index: {}]
  %v2 = vld [vmem:[%s0] sm:$0xff]
  %vm3 = vcmask 7168
  %4 = vst.msk [vmem:[%s1] ss:$4 sm:$0xff] %vm3, %v2
  %v5 = vld [vmem:[%s0] sm:$0xff]
  %6 = vrot.lane.b32.xlu0 %v5, 127
  %v7 = vpop.permute.xlu0 %6
  %vm8 = vcmask 7168
  %s9 = scalar_lea.vmem %s1, 1
  %10 = vst.msk [vmem:[%s9] ss:$4 sm:$0xff] %vm8, %v7
  %v11 = vld [vmem:[%s0] sm:$0xff]
  %12 = vrot.lane.b32.xlu0 %v11, 126
  %v13 = vpop.permute.xlu0 %12
  %vm14 = vcmask 7168
  %s15 = scalar_lea.vmem %s1, 2
  %16 = vst.msk [vmem:[%s15] ss:$4 sm:$0xff] %vm14, %v13
  %v17 = vld [vmem:[%s0] sm:$0xff]
  %18 = vrot.lane.b32.xlu0 %v17, 125
  %v19 = vpop.permute.xlu0 %18
  %vm20 = vcmask 7168
  %s21 = scalar_lea.vmem %s1, 3
  %22 = vst.msk [vmem:[%s21] ss:$4 sm:$0xff] %vm20, %v19

// kernel: tile.8
$region0: #{tile.8}
  #allocation0 [shape = 's32[1]{0}', space=sflag, size = 0x4, scoped, tag = 'scoped memory for tile.8']
  %s0 = inlined_call_operand.vmem [shape: f32[4], index: 0, kind: input, shape index: {}]
  %s1 = inlined_call_operand.vmem [shape: f32[8,4], index: 1, kind: output, shape index: {}]
  // Predicated region
  $region2: #{tile.8} parent=0 // pred_check
    _
  $region3: #{tile.8} parent=0 // pred_check_branch
    %3 = sbr.rel (0) target = $region5
  $region4: #{tile.8} parent=0 // pred_region
    _
  $region5: #{tile.8} parent=0 // pred_fallthru
    _
  %v4 = vld [vmem:[%s0] ss:$0 sm:$0xff]
  %5 = vst [vmem:[%s1] sm:$0xff] %v4

// kernel: video_conv_forward.1
$region0: #{video_conv_forward.1}
  #allocation0 [shape = 'u32[]', space=smem, size = 0x4, offset = 0x4, fixed_abs, tag = 'smem constant byte address 0x4 - core index']
  #allocation1 [shape = 'u32[144,128]{1,0:T(1,128)}', space=vmem, size = 0x12000, scoped, tag = 'internal scratch']
  %s0 = inlined_call_operand.vmem [shape: f32[32,4], index: 0, kind: input, shape index: {}]
  %s1 = inlined_call_operand.vmem [shape: f32[4,16], index: 1, kind: input, shape index: {}]
  %s2 = inlined_call_operand.vmem [shape: f32[32,1], index: 2, kind: input, shape index: {}]
  %s3 = inlined_call_operand.vmem [shape: f32[32,16], index: 3, kind: output, shape index: {}]
  %s4 = sld [smem:[#allocation0]]
  $region22: #{video_conv_forward.1} parent=0
    _
  %s6 = ssub.s32 1, %s4
  %s7 = scalar_select 0, %s6, %s4
  // Predicated region
  $region2: #{video_conv_forward.1} parent=0 // pred_check
    _
  $region3: #{video_conv_forward.1} parent=0 // pred_check_branch
    %9 = sbr.rel (0) target = $region5
  $region4: #{video_conv_forward.1} parent=0 // pred_region
    _
  $region5: #{video_conv_forward.1} parent=0 // pred_fallthru
    _
  // Predicated region
  $region6: #{video_conv_forward.1} parent=0 // pred_check
    _
  $region7: #{video_conv_forward.1} parent=0 // pred_check_branch
    %11 = sbr.rel (0) target = $region9
  $region8: #{video_conv_forward.1} parent=0 // pred_region
    _
  $region9: #{video_conv_forward.1} parent=0 // pred_fallthru
    _
  // Predicated region
  $region10: #{video_conv_forward.1} parent=0 // pred_check
    _
  $region11: #{video_conv_forward.1} parent=0 // pred_check_branch
    %13 = sbr.rel (0) target = $region13
  $region12: #{video_conv_forward.1} parent=0 // pred_region
    _
  $region13: #{video_conv_forward.1} parent=0 // pred_fallthru
    _
  %v14 = vld [vmem:[%s0] sm:$0xff]
  %v15 = vld [vmem:[%s0 + $0x8] sm:$0xff]
  %v16 = vld [vmem:[%s0 + $0x10] sm:$0xff]
  %v17 = vld [vmem:[%s0 + $0x18] sm:$0xff]
  %v18 = vld [vmem:[%s1] sm:$0xf]
  %v19 = vld [vmem:[%s2] sm:$0xff]
  %v20 = vld [vmem:[%s2 + $0x8] sm:$0xff]
  %v21 = vld [vmem:[%s2 + $0x10] sm:$0xff]
  %v22 = vld [vmem:[%s2 + $0x18] sm:$0xff]
  %24 = vset.pattern.permute.xlu0 0
  %25 = vperm.xlu0 %24, %v19
  %v26 = vpop.permute.xlu0 %25
  %29 = vset.pattern.permute.xlu0 0
  %30 = vperm.xlu0 %29, %v20
  %v31 = vpop.permute.xlu0 %30
  %34 = vset.pattern.permute.xlu0 0
  %35 = vperm.xlu0 %34, %v21
  %v36 = vpop.permute.xlu0 %35
  %39 = vset.pattern.permute.xlu0 0
  %40 = vperm.xlu0 %39, %v22
  %v41 = vpop.permute.xlu0 %40
  %vm43 = vcmask 31744
  %v45 = vsel %vm43, %v14, 0
  %v48 = vsel %vm43, %v15, 0
  %v51 = vsel %vm43, %v16, 0
  %v54 = vsel %vm43, %v17, 0
  %vm56 = vcmask 1043456
  %v58 = vsel %vm56, %v18, 0
  %60 = vmatprep.subr.mxu0 0.0
  %61 = vmatpush1.msra.mxu0 0.0
  %62 = vmatprep.subr.mxu0 0.0
  %63 = vmatpush1.msra.mxu0 0.0
  %64 = vmatprep.subr.mxu0 0.0
  %65 = vmatpush1.msra.mxu0 0.0
  %66 = vmatprep.subr.mxu0 0.0
  %67 = vmatpush1.msra.mxu0 0.0
  %68 = vmatprep.subr.mxu0 0.0
  %69 = vmatpush1.msra.mxu0 0.0
  %70 = vmatprep.subr.mxu0 0.0
  %71 = vmatpush1.msra.mxu0 0.0
  %72 = vmatprep.subr.mxu0 0.0
  %73 = vmatpush1.msra.mxu0 0.0
  %74 = vmatprep.subr.mxu0 0.0
  %75 = vmatpush1.msra.mxu0 0.0
  %76 = vmatprep.subr.mxu0 0.0
  %77 = vmatpush1.msra.mxu0 0.0
  %78 = vmatprep.subr.mxu0 0.0
  %79 = vmatpush1.msra.mxu0 0.0
  %80 = vmatprep.subr.mxu0 0.0
  %81 = vmatpush1.msra.mxu0 0.0
  %82 = vmatprep.subr.mxu0 0.0
  %83 = vmatpush1.msra.mxu0 0.0
  %84 = vmatprep.subr.mxu0 0.0
  %85 = vmatpush1.msra.mxu0 0.0
  %86 = vmatprep.subr.mxu0 0.0
  %87 = vmatpush1.msra.mxu0 0.0
  %88 = vmatprep.subr.mxu0 0.0
  %89 = vmatpush1.msra.mxu0 0.0
  %90 = vmatprep.subr.mxu0 0.0
  %91 = vmatpush1.msra.mxu0 %v58
  %92 = vmatprep.subr.mxu0 0.0
  %93 = vmatpush2.msra.mxu0 0.0
  %94 = vmatprep.subr.mxu0 0.0
  %95 = vmatpush2.msra.mxu0 0.0
  %96 = vmatprep.subr.mxu0 0.0
  %97 = vmatpush2.msra.mxu0 0.0
  %98 = vmatprep.subr.mxu0 0.0
  %99 = vmatpush2.msra.mxu0 0.0
  %100 = vmatprep.subr.mxu0 0.0
  %101 = vmatpush2.msra.mxu0 0.0
  %102 = vmatprep.subr.mxu0 0.0
  %103 = vmatpush2.msra.mxu0 0.0
  %104 = vmatprep.subr.mxu0 0.0
  %105 = vmatpush2.msra.mxu0 0.0
  %106 = vmatprep.subr.mxu0 0.0
  %107 = vmatpush2.msra.mxu0 0.0
  %108 = vmatprep.subr.mxu0 0.0
  %109 = vmatpush2.msra.mxu0 0.0
  %110 = vmatprep.subr.mxu0 0.0
  %111 = vmatpush2.msra.mxu0 0.0
  %112 = vmatprep.subr.mxu0 0.0
  %113 = vmatpush2.msra.mxu0 0.0
  %114 = vmatprep.subr.mxu0 0.0
  %115 = vmatpush2.msra.mxu0 0.0
  %116 = vmatprep.subr.mxu0 0.0
  %117 = vmatpush2.msra.mxu0 0.0
  %118 = vmatprep.subr.mxu0 0.0
  %119 = vmatpush2.msra.mxu0 0.0
  %120 = vmatprep.subr.mxu0 0.0
  %121 = vmatpush2.msra.mxu0 0.0
  %122 = vmatprep.subr.mxu0 0.0
  %123 = vmatpush2.msra.mxu0 0.0
  %124 = vmatprep.mubr.f32.mxu0 0.0
  %125 = vmatmul.mubr.f32.gmra.mxu0 %v45
  %v126 = vpop.f32.mrf.mxu0
  %v127 = vadd.f32 %v26, %v126
  %v128 = vpop.f32.mrf.mxu0
  %129 = vmatprep.mubr.f32.mxu0 0.0
  %130 = vmatmul.mubr.f32.gmra.mxu0 %v48
  %v131 = vpop.f32.mrf.mxu0
  %v132 = vadd.f32 %v31, %v131
  %v133 = vpop.f32.mrf.mxu0
  %134 = vmatprep.mubr.f32.mxu0 0.0
  %135 = vmatmul.mubr.f32.gmra.mxu0 %v51
  %v136 = vpop.f32.mrf.mxu0
  %v137 = vadd.f32 %v36, %v136
  %v138 = vpop.f32.mrf.mxu0
  %139 = vmatprep.mubr.f32.mxu0 0.0
  %140 = vmatmul.mubr.f32.gmra.mxu0 %v54
  %v141 = vpop.f32.mrf.mxu0
  %v142 = vadd.f32 %v41, %v141
  %v143 = vpop.f32.mrf.mxu0
  %144 = vdwg.mxu0
  %vm145 = vcmask 130048
  %146 = vst.msk [vmem:[%s3] sm:$0xff] %vm145, %v127
  %147 = vst.msk [vmem:[%s3 + $0x8] sm:$0xff] %vm145, %v132
  %148 = vst.msk [vmem:[%s3 + $0x10] sm:$0xff] %vm145, %v137
  %149 = vst.msk [vmem:[%s3 + $0x18] sm:$0xff] %vm145, %v142
  // Predicated region
  $region14: #{video_conv_forward.1} parent=0 // pred_check
    _
  $region15: #{video_conv_forward.1} parent=0 // pred_check_branch
    %151 = sbr.rel (0) target = $region17
  $region16: #{video_conv_forward.1} parent=0 // pred_region
    _
  $region17: #{video_conv_forward.1} parent=0 // pred_fallthru
    _
  // Predicated region
  $region18: #{video_conv_forward.1} parent=0 // pred_check
    _
  $region19: #{video_conv_forward.1} parent=0 // pred_check_branch
    %153 = sbr.rel (0) target = $region21
  $region20: #{video_conv_forward.1} parent=0 // pred_region
    _
  $region21: #{video_conv_forward.1} parent=0 // pred_fallthru
    _

</llo_original>
